<compile_context>
chip_gen: v6e
topology: v6e:2x2x1
jax: 0.10.0
libtpu: 0.0.40
codegen_flags: <defaults>
</compile_context>

<pallas_src>
import jax
import jax.numpy as jnp
from jax import lax
from jax.experimental import pallas as pl
from jax.experimental.pallas import tpu as pltpu


def _round_up(x, m):
    return (x + m - 1) // m * m


def autoencoder_kernel(x_ref, w1_ref, b1_ref, w2_ref, b2_ref, o_ref):
    # x_ref : (TB, Din_p)   input batch tile (input dtype: f32 or bf16)
    # w1_ref: (Dh_p, Din_p) linear1.weight, PyTorch layout (no transpose)
    # b1_ref: (1, Dh_p)     f32
    # w2_ref: (Din_p, Dh_p) linear2.weight, PyTorch layout
    # b2_ref: (1, Din_p)    f32
    # o_ref : (TB, Din_p)   output tile
    x = x_ref[...]
    w1 = w1_ref[...]

    # encoder: h = x @ W1^T  (contract over dim_in), f32 accumulation on MXU.
    h = lax.dot_general(
        x, w1, (((1,), (1,)), ((), ())), preferred_element_type=jnp.float32
    )
    h = h + b1_ref[...]  # (TB, Dh_p), f32

    w2 = w2_ref[...]
    # decoder: y = h @ W2^T  (contract over dim_hidden); MXU inputs in weight dtype.
    y = lax.dot_general(
        h.astype(w2.dtype), w2, (((1,), (1,)), ((), ())),
        preferred_element_type=jnp.float32,
    )
    y = y + b2_ref[...]  # (TB, Din_p), f32

    # sigmoid epilogue in f32 (exp on the EUP slot), lane-dense full-width store.
    o_ref[...] = jax.nn.sigmoid(y).astype(o_ref.dtype)


@jax.jit
def autoencoder_forward(x, w1, b1, w2, b2):
    """
    x  : (B, dim_in)
    w1 : (dim_hidden, dim_in)   -- PyTorch linear1.weight convention
    b1 : (dim_hidden,)
    w2 : (dim_in, dim_hidden)   -- PyTorch linear2.weight convention
    b2 : (dim_in,)
    Returns sigmoid((x @ w1.T + b1) @ w2.T + b2), shape (B, dim_in).
    """
    B, dim_in = x.shape
    dim_hidden = w1.shape[0]

    # Lane-dense padding of the feature dims to multiples of 128.
    din_p = _round_up(dim_in, 128)
    dh_p = _round_up(dim_hidden, 128)

    # Batch tile: multiple of 8 sublanes, capped so that resident weights plus
    # double-buffered (TB, din_p) x/o tiles stay far below the 64 MiB VMEM of
    # v7x (and the default scoped limits on v5e/v6e).
    tb = min(_round_up(B, 8), 256)
    b_p = _round_up(B, tb)

    dt = x.dtype  # keep MXU operands in the input dtype (bf16-friendly)
    x_p = jnp.zeros((b_p, din_p), dt).at[:B, :dim_in].set(x)
    w1_p = jnp.zeros((dh_p, din_p), dt).at[:dim_hidden, :dim_in].set(w1.astype(dt))
    w2_p = jnp.zeros((din_p, dh_p), dt).at[:dim_in, :dim_hidden].set(w2.astype(dt))
    b1_p = (
        jnp.zeros((1, dh_p), jnp.float32).at[0, :dim_hidden].set(b1.astype(jnp.float32))
    )
    b2_p = (
        jnp.zeros((1, din_p), jnp.float32).at[0, :dim_in].set(b2.astype(jnp.float32))
    )

    grid = (b_p // tb,)

    out_p = pl.pallas_call(
        autoencoder_kernel,
        out_shape=jax.ShapeDtypeStruct((b_p, din_p), dt),
        grid_spec=pltpu.PrefetchScalarGridSpec(
            num_scalar_prefetch=0,
            grid=grid,
            in_specs=[
                # x tile: pipelined across the batch grid.
                pl.BlockSpec((tb, din_p), lambda i: (i, 0)),
                # Weights / biases: constant index_map -> resident across grid.
                pl.BlockSpec((dh_p, din_p), lambda i: (0, 0)),
                pl.BlockSpec((1, dh_p), lambda i: (0, 0)),
                pl.BlockSpec((din_p, dh_p), lambda i: (0, 0)),
                pl.BlockSpec((1, din_p), lambda i: (0, 0)),
            ],
            out_specs=pl.BlockSpec((tb, din_p), lambda i: (i, 0)),
        ),
        compiler_params=pltpu.CompilerParams(
            dimension_semantics=("parallel",),
            vmem_limit_bytes=64 * 1024 * 1024,
        ),
    )(x_p, w1_p, b1_p, w2_p, b2_p)

    # Strip batch / feature padding.
    return out_p[:B, :dim_in]


def _reference(x, w1, b1, w2, b2):
    return jax.nn.sigmoid((x @ w1.T + b1) @ w2.T + b2)


if __name__ == "__main__":
    key = jax.random.PRNGKey(0)

    # --- case 1: small shapes matching the module's toy config -------------
    B, dim_in, dim_hidden = 8, 16, 32
    kx, k1, k2, k3, k4, key = jax.random.split(key, 6)

    x = jax.random.normal(kx, (B, dim_in), dtype=jnp.float32)
    bound1 = 1.0 / (dim_in ** 0.5)
    w1 = jax.random.uniform(k1, (dim_hidden, dim_in), jnp.float32, -bound1, bound1)
    b1 = jax.random.uniform(k2, (dim_hidden,), jnp.float32, -bound1, bound1)
    bound2 = 1.0 / (dim_hidden ** 0.5)
    w2 = jax.random.uniform(k3, (dim_in, dim_hidden), jnp.float32, -bound2, bound2)
    b2 = jax.random.uniform(k4, (dim_in,), jnp.float32, -bound2, bound2)

    out = autoencoder_forward(x, w1, b1, w2, b2)
    jax.block_until_ready(out)
    ref = _reference(x, w1, b1, w2, b2)
    assert out.shape == (B, dim_in)
    assert jnp.allclose(out, ref, atol=1e-5, rtol=1e-5)

    # --- case 2: exercise grid > 1 and feature/batch padding ----------------
    B2, din2, dh2 = 260, 96, 40
    kx, k1, k2, k3, k4, key = jax.random.split(key, 6)
    x2 = jax.random.normal(kx, (B2, din2), dtype=jnp.float32)
    b1a = 1.0 / (din2 ** 0.5)
    w1b = jax.random.uniform(k1, (dh2, din2), jnp.float32, -b1a, b1a)
    b1b = jax.random.uniform(k2, (dh2,), jnp.float32, -b1a, b1a)
    b2a = 1.0 / (dh2 ** 0.5)
    w2b = jax.random.uniform(k3, (din2, dh2), jnp.float32, -b2a, b2a)
    b2b = jax.random.uniform(k4, (din2,), jnp.float32, -b2a, b2a)

    out2 = autoencoder_forward(x2, w1b, b1b, w2b, b2b)
    jax.block_until_ready(out2)
    ref2 = _reference(x2, w1b, b1b, w2b, b2b)
    assert out2.shape == (B2, din2)
    assert jnp.allclose(out2, ref2, atol=1e-5, rtol=1e-5)

    print("KERNEL_OK")
</pallas_src>

<mosaic_0001>
module attributes {stable_mosaic.version = 11 : i64} {
  func.func @autoencoder_kernel(%arg0: i32, %arg1: memref<8x128xf32, #tpu.memory_space<vmem>>, %arg2: memref<128x128xf32, #tpu.memory_space<vmem>>, %arg3: memref<1x128xf32, #tpu.memory_space<vmem>>, %arg4: memref<128x128xf32, #tpu.memory_space<vmem>>, %arg5: memref<1x128xf32, #tpu.memory_space<vmem>>, %arg6: memref<8x128xf32, #tpu.memory_space<vmem>>) attributes {dimension_semantics = [#tpu.dimension_semantics<parallel>], iteration_bounds = array<i64: 1>, scalar_prefetch = 0 : i64, scratch_operands = 0 : i64, tpu.core_type = #tpu.core_type<tc>, window_params = [{transform_indices = @transform_0, window_bounds = array<i64: 8, 128>}, {pipeline_mode = #tpu.pipeline_mode<synchronous>, transform_indices = @transform_1, window_bounds = array<i64: 128, 128>}, {pipeline_mode = #tpu.pipeline_mode<synchronous>, transform_indices = @transform_2, window_bounds = array<i64: 1, 128>}, {pipeline_mode = #tpu.pipeline_mode<synchronous>, transform_indices = @transform_3, window_bounds = array<i64: 128, 128>}, {pipeline_mode = #tpu.pipeline_mode<synchronous>, transform_indices = @transform_4, window_bounds = array<i64: 1, 128>}, {transform_indices = @transform_5, window_bounds = array<i64: 8, 128>}]} {
    %c0 = arith.constant 0 : index
    %c0_0 = arith.constant 0 : index
    %0 = vector.load %arg1[%c0, %c0_0] : memref<8x128xf32, #tpu.memory_space<vmem>>, vector<8x128xf32>
    %c0_1 = arith.constant 0 : index
    %c0_2 = arith.constant 0 : index
    %1 = vector.load %arg2[%c0_1, %c0_2] : memref<128x128xf32, #tpu.memory_space<vmem>>, vector<128x128xf32>
    %cst = arith.constant dense<0.000000e+00> : vector<8x128xf32>
    %2 = tpu.matmul %0, %1, %cst {dimension_numbers = #tpu.dot_dimension_numbers<[1], [1], [0], [0], [0, 0, 1, 0], [], []>} : vector<8x128xf32>, vector<128x128xf32>, vector<8x128xf32> -> vector<8x128xf32>
    %c0_3 = arith.constant 0 : index
    %c0_4 = arith.constant 0 : index
    %3 = vector.load %arg3[%c0_3, %c0_4] : memref<1x128xf32, #tpu.memory_space<vmem>>, vector<1x128xf32>
    %4 = vector.broadcast %3 : vector<1x128xf32> to vector<8x128xf32>
    %5 = arith.addf %2, %4 : vector<8x128xf32>
    %c0_5 = arith.constant 0 : index
    %c0_6 = arith.constant 0 : index
    %6 = vector.load %arg4[%c0_5, %c0_6] : memref<128x128xf32, #tpu.memory_space<vmem>>, vector<128x128xf32>
    %cst_7 = arith.constant dense<0.000000e+00> : vector<8x128xf32>
    %7 = tpu.matmul %5, %6, %cst_7 {dimension_numbers = #tpu.dot_dimension_numbers<[1], [1], [0], [0], [0, 0, 1, 0], [], []>} : vector<8x128xf32>, vector<128x128xf32>, vector<8x128xf32> -> vector<8x128xf32>
    %c0_8 = arith.constant 0 : index
    %c0_9 = arith.constant 0 : index
    %8 = vector.load %arg5[%c0_8, %c0_9] : memref<1x128xf32, #tpu.memory_space<vmem>>, vector<1x128xf32>
    %9 = vector.broadcast %8 : vector<1x128xf32> to vector<8x128xf32>
    %10 = arith.addf %7, %9 : vector<8x128xf32>
    %11 = arith.negf %10 : vector<8x128xf32>
    %12 = math.exp %11 : vector<8x128xf32>
    %cst_10 = arith.constant 1.000000e+00 : f32
    %13 = vector.broadcast %cst_10 : f32 to vector<8x128xf32>
    %14 = arith.addf %13, %12 : vector<8x128xf32>
    %15 = arith.divf %13, %14 : vector<8x128xf32>
    %c0_11 = arith.constant 0 : index
    %c0_12 = arith.constant 0 : index
    %16 = vector.load %arg6[%c0_11, %c0_12] : memref<8x128xf32, #tpu.memory_space<vmem>>, vector<8x128xf32>
    tpu.vector_store %arg6[%c0_11, %c0_12], %15 {strides = array<i32>} : memref<8x128xf32, #tpu.memory_space<vmem>>, vector<8x128xf32>,
    return
  }
  func.func @transform_0(%arg0: i32) -> (i32, i32) {
    %c0_i32 = arith.constant 0 : i32
    %c0_i32_0 = arith.constant 0 : i32
    return %arg0, %c0_i32 : i32, i32
  }
  func.func @transform_1(%arg0: i32) -> (i32, i32) {
    %c0_i32 = arith.constant 0 : i32
    %c0_i32_0 = arith.constant 0 : i32
    %c0_i32_1 = arith.constant 0 : i32
    return %c0_i32, %c0_i32_0 : i32, i32
  }
  func.func @transform_2(%arg0: i32) -> (i32, i32) {
    %c0_i32 = arith.constant 0 : i32
    %c0_i32_0 = arith.constant 0 : i32
    %c0_i32_1 = arith.constant 0 : i32
    return %c0_i32, %c0_i32_0 : i32, i32
  }
  func.func @transform_3(%arg0: i32) -> (i32, i32) {
    %c0_i32 = arith.constant 0 : i32
    %c0_i32_0 = arith.constant 0 : i32
    %c0_i32_1 = arith.constant 0 : i32
    return %c0_i32, %c0_i32_0 : i32, i32
  }
  func.func @transform_4(%arg0: i32) -> (i32, i32) {
    %c0_i32 = arith.constant 0 : i32
    %c0_i32_0 = arith.constant 0 : i32
    %c0_i32_1 = arith.constant 0 : i32
    return %c0_i32, %c0_i32_0 : i32, i32
  }
  func.func @transform_5(%arg0: i32) -> (i32, i32) {
    %c0_i32 = arith.constant 0 : i32
    %c0_i32_0 = arith.constant 0 : i32
    return %arg0, %c0_i32 : i32, i32
  }
}

</mosaic_0001>

<llo_original>
// kernel: autoencoder_forward.1
$region0: #{autoencoder_forward.1}
  #allocation0 [shape = 'u32[]', space=smem, size = 0x4, offset = 0x4, fixed_abs, tag = 'smem constant byte address 0x4 - core index']
  #allocation1 [shape = 'u32[144,128]{1,0:T(1,128)}', space=vmem, size = 0x12000, scoped, tag = 'internal scratch']
  %s0 = inlined_call_operand.vmem [shape: f32[8,128], index: 0, kind: input, shape index: {}]
  %s1 = inlined_call_operand.vmem [shape: f32[128,128], index: 1, kind: input, shape index: {}]
  %s2 = inlined_call_operand.vmem [shape: f32[1,128], index: 2, kind: input, shape index: {}]
  %s3 = inlined_call_operand.vmem [shape: f32[128,128], index: 3, kind: input, shape index: {}]
  %s4 = inlined_call_operand.vmem [shape: f32[1,128], index: 4, kind: input, shape index: {}]
  %s5 = inlined_call_operand.hbm [shape: f32[8,128], index: 5, kind: output, shape index: {}]
  %s6 = sld [smem:[#allocation0]]
  $region30: #{autoencoder_forward.1} parent=0
    _
  %s8 = ssub.s32 1, %s6
  %s9 = scalar_select 0, %s8, %s6
  $region1: #{autoencoder_forward.1} parent=0
    #allocation2 [shape = 'u8[4096]{0}', space=vmem, size = 0x1000, scoped, tag = 'output window, operand 0, single buffered']
    #allocation3 [shape = 's32[1]{0}', space=sflag, size = 0x4, scoped, tag = 'scoped memory for autoencoder_forward.1']
    %10 = vsyncpa [#allocation3], 0
    // Predicated region
    $region2: #{autoencoder_forward.1} parent=1 // pred_check
      _
    $region3: #{autoencoder_forward.1} parent=1 // pred_check_branch
      %12 = sbr.rel (0) target = $region5
    $region4: #{autoencoder_forward.1} parent=1 // pred_region
      _
    $region5: #{autoencoder_forward.1} parent=1 // pred_fallthru
      _
    // Predicated region
    $region6: #{autoencoder_forward.1} parent=1 // pred_check
      _
    $region7: #{autoencoder_forward.1} parent=1 // pred_check_branch
      %14 = sbr.rel (0) target = $region9
    $region8: #{autoencoder_forward.1} parent=1 // pred_region
      _
    $region9: #{autoencoder_forward.1} parent=1 // pred_fallthru
      _
    // Predicated region
    $region10: #{autoencoder_forward.1} parent=1 // pred_check
      _
    $region11: #{autoencoder_forward.1} parent=1 // pred_check_branch
      %16 = sbr.rel (0) target = $region13
    $region12: #{autoencoder_forward.1} parent=1 // pred_region
      _
    $region13: #{autoencoder_forward.1} parent=1 // pred_fallthru
      _
    // Predicated region
    $region14: #{autoencoder_forward.1} parent=1 // pred_check
      _
    $region15: #{autoencoder_forward.1} parent=1 // pred_check_branch
      %18 = sbr.rel (0) target = $region17
    $region16: #{autoencoder_forward.1} parent=1 // pred_region
      _
    $region17: #{autoencoder_forward.1} parent=1 // pred_fallthru
      _
    // Predicated region
    $region18: #{autoencoder_forward.1} parent=1 // pred_check
      _
    $region19: #{autoencoder_forward.1} parent=1 // pred_check_branch
      %20 = sbr.rel (0) target = $region21
    $region20: #{autoencoder_forward.1} parent=1 // pred_region
      _
    $region21: #{autoencoder_forward.1} parent=1 // pred_fallthru
      _
    %v21 = vld [vmem:[%s0] sm:$0xff]
    %v22 = vld [vmem:[%s1] sm:$0xff]
    %v23 = vld [vmem:[%s1 + $0x8] sm:$0xff]
    %v24 = vld [vmem:[%s1 + $0x10] sm:$0xff]
    %v25 = vld [vmem:[%s1 + $0x18] sm:$0xff]
    %v26 = vld [vmem:[%s1 + $0x20] sm:$0xff]
    %v27 = vld [vmem:[%s1 + $0x28] sm:$0xff]
    %v28 = vld [vmem:[%s1 + $0x30] sm:$0xff]
    %v29 = vld [vmem:[%s1 + $0x38] sm:$0xff]
    %v30 = vld [vmem:[%s1 + $0x40] sm:$0xff]
    %v31 = vld [vmem:[%s1 + $0x48] sm:$0xff]
    %v32 = vld [vmem:[%s1 + $0x50] sm:$0xff]
    %v33 = vld [vmem:[%s1 + $0x58] sm:$0xff]
    %v34 = vld [vmem:[%s1 + $0x60] sm:$0xff]
    %v35 = vld [vmem:[%s1 + $0x68] sm:$0xff]
    %v36 = vld [vmem:[%s1 + $0x70] sm:$0xff]
    %v37 = vld [vmem:[%s1 + $0x78] sm:$0xff]
    %v38 = vld [vmem:[%s2] sm:$0x1]
    %v40 = vlaneseq
    %v41 = vshrl.u32 %v40, 7
    %v42 = vsub.s32 0, %v41
    %v43 = vrot.slane %v38, %v42
    %45 = vmatprep.subr.mxu0 0.0
    %46 = vmatpush1.xpose.msra.mxu0 %v37
    %47 = vmatprep.subr.mxu0 0.0
    %48 = vmatpush1.xpose.msra.mxu0 %v36
    %49 = vmatprep.subr.mxu0 0.0
    %50 = vmatpush1.xpose.msra.mxu0 %v35
    %51 = vmatprep.subr.mxu0 0.0
    %52 = vmatpush1.xpose.msra.mxu0 %v34
    %53 = vmatprep.subr.mxu0 0.0
    %54 = vmatpush1.xpose.msra.mxu0 %v33
    %55 = vmatprep.subr.mxu0 0.0
    %56 = vmatpush1.xpose.msra.mxu0 %v32
    %57 = vmatprep.subr.mxu0 0.0
    %58 = vmatpush1.xpose.msra.mxu0 %v31
    %59 = vmatprep.subr.mxu0 0.0
    %60 = vmatpush1.xpose.msra.mxu0 %v30
    %61 = vmatprep.subr.mxu0 0.0
    %62 = vmatpush1.xpose.msra.mxu0 %v29
    %63 = vmatprep.subr.mxu0 0.0
    %64 = vmatpush1.xpose.msra.mxu0 %v28
    %65 = vmatprep.subr.mxu0 0.0
    %66 = vmatpush1.xpose.msra.mxu0 %v27
    %67 = vmatprep.subr.mxu0 0.0
    %68 = vmatpush1.xpose.msra.mxu0 %v26
    %69 = vmatprep.subr.mxu0 0.0
    %70 = vmatpush1.xpose.msra.mxu0 %v25
    %71 = vmatprep.subr.mxu0 0.0
    %72 = vmatpush1.xpose.msra.mxu0 %v24
    %73 = vmatprep.subr.mxu0 0.0
    %74 = vmatpush1.xpose.msra.mxu0 %v23
    %75 = vmatprep.subr.mxu0 0.0
    %76 = vmatpush1.xpose.msra.mxu0 %v22
    %77 = vmatprep.subr.mxu0 0.0
    %78 = vmatpush2.xpose.msra.mxu0 0.0
    %79 = vmatprep.subr.mxu0 0.0
    %80 = vmatpush2.xpose.msra.mxu0 0.0
    %81 = vmatprep.subr.mxu0 0.0
    %82 = vmatpush2.xpose.msra.mxu0 0.0
    %83 = vmatprep.subr.mxu0 0.0
    %84 = vmatpush2.xpose.msra.mxu0 0.0
    %85 = vmatprep.subr.mxu0 0.0
    %86 = vmatpush2.xpose.msra.mxu0 0.0
    %87 = vmatprep.subr.mxu0 0.0
    %88 = vmatpush2.xpose.msra.mxu0 0.0
    %89 = vmatprep.subr.mxu0 0.0
    %90 = vmatpush2.xpose.msra.mxu0 0.0
    %91 = vmatprep.subr.mxu0 0.0
    %92 = vmatpush2.xpose.msra.mxu0 0.0
    %93 = vmatprep.subr.mxu0 0.0
    %94 = vmatpush2.xpose.msra.mxu0 0.0
    %95 = vmatprep.subr.mxu0 0.0
    %96 = vmatpush2.xpose.msra.mxu0 0.0
    %97 = vmatprep.subr.mxu0 0.0
    %98 = vmatpush2.xpose.msra.mxu0 0.0
    %99 = vmatprep.subr.mxu0 0.0
    %100 = vmatpush2.xpose.msra.mxu0 0.0
    %101 = vmatprep.subr.mxu0 0.0
    %102 = vmatpush2.xpose.msra.mxu0 0.0
    %103 = vmatprep.subr.mxu0 0.0
    %104 = vmatpush2.xpose.msra.mxu0 0.0
    %105 = vmatprep.subr.mxu0 0.0
    %106 = vmatpush2.xpose.msra.mxu0 0.0
    %107 = vmatprep.subr.mxu0 0.0
    %108 = vmatpush2.xpose.msra.mxu0 0.0
    %109 = vmatprep.mubr.f32.mxu0 0.0
    %110 = vmatmul.mubr.f32.gmra.mxu0 %v21
    %v111 = vpop.f32.mrf.mxu0
    %v112 = vadd.f32 %v43, %v111
    %v113 = vpop.f32.mrf.mxu0
    %114 = vdwg.mxu0
    %v115 = vld [vmem:[%s3] sm:$0xff]
    %v116 = vld [vmem:[%s3 + $0x8] sm:$0xff]
    %v117 = vld [vmem:[%s3 + $0x10] sm:$0xff]
    %v118 = vld [vmem:[%s3 + $0x18] sm:$0xff]
    %v119 = vld [vmem:[%s3 + $0x20] sm:$0xff]
    %v120 = vld [vmem:[%s3 + $0x28] sm:$0xff]
    %v121 = vld [vmem:[%s3 + $0x30] sm:$0xff]
    %v122 = vld [vmem:[%s3 + $0x38] sm:$0xff]
    %v123 = vld [vmem:[%s3 + $0x40] sm:$0xff]
    %v124 = vld [vmem:[%s3 + $0x48] sm:$0xff]
    %v125 = vld [vmem:[%s3 + $0x50] sm:$0xff]
    %v126 = vld [vmem:[%s3 + $0x58] sm:$0xff]
    %v127 = vld [vmem:[%s3 + $0x60] sm:$0xff]
    %v128 = vld [vmem:[%s3 + $0x68] sm:$0xff]
    %v129 = vld [vmem:[%s3 + $0x70] sm:$0xff]
    %v130 = vld [vmem:[%s3 + $0x78] sm:$0xff]
    %v131 = vld [vmem:[%s4] sm:$0x1]
    %v133 = vlaneseq
    %v134 = vshrl.u32 %v133, 7
    %v135 = vsub.s32 0, %v134
    %v136 = vrot.slane %v131, %v135
    %138 = vmatprep.subr.mxu0 0.0
    %139 = vmatpush1.xpose.msra.mxu0 %v130
    %140 = vmatprep.subr.mxu0 0.0
    %141 = vmatpush1.xpose.msra.mxu0 %v129
    %142 = vmatprep.subr.mxu0 0.0
    %143 = vmatpush1.xpose.msra.mxu0 %v128
    %144 = vmatprep.subr.mxu0 0.0
    %145 = vmatpush1.xpose.msra.mxu0 %v127
    %146 = vmatprep.subr.mxu0 0.0
    %147 = vmatpush1.xpose.msra.mxu0 %v126
    %148 = vmatprep.subr.mxu0 0.0
    %149 = vmatpush1.xpose.msra.mxu0 %v125
    %150 = vmatprep.subr.mxu0 0.0
    %151 = vmatpush1.xpose.msra.mxu0 %v124
    %152 = vmatprep.subr.mxu0 0.0
    %153 = vmatpush1.xpose.msra.mxu0 %v123
    %154 = vmatprep.subr.mxu0 0.0
    %155 = vmatpush1.xpose.msra.mxu0 %v122
    %156 = vmatprep.subr.mxu0 0.0
    %157 = vmatpush1.xpose.msra.mxu0 %v121
    %158 = vmatprep.subr.mxu0 0.0
    %159 = vmatpush1.xpose.msra.mxu0 %v120
    %160 = vmatprep.subr.mxu0 0.0
    %161 = vmatpush1.xpose.msra.mxu0 %v119
    %162 = vmatprep.subr.mxu0 0.0
    %163 = vmatpush1.xpose.msra.mxu0 %v118
    %164 = vmatprep.subr.mxu0 0.0
    %165 = vmatpush1.xpose.msra.mxu0 %v117
    %166 = vmatprep.subr.mxu0 0.0
    %167 = vmatpush1.xpose.msra.mxu0 %v116
    %168 = vmatprep.subr.mxu0 0.0
    %169 = vmatpush1.xpose.msra.mxu0 %v115
    %170 = vmatprep.subr.mxu0 0.0
    %171 = vmatpush2.xpose.msra.mxu0 0.0
    %172 = vmatprep.subr.mxu0 0.0
    %173 = vmatpush2.xpose.msra.mxu0 0.0
    %174 = vmatprep.subr.mxu0 0.0
    %175 = vmatpush2.xpose.msra.mxu0 0.0
    %176 = vmatprep.subr.mxu0 0.0
    %177 = vmatpush2.xpose.msra.mxu0 0.0
    %178 = vmatprep.subr.mxu0 0.0
    %179 = vmatpush2.xpose.msra.mxu0 0.0
    %180 = vmatprep.subr.mxu0 0.0
    %181 = vmatpush2.xpose.msra.mxu0 0.0
    %182 = vmatprep.subr.mxu0 0.0
    %183 = vmatpush2.xpose.msra.mxu0 0.0
    %184 = vmatprep.subr.mxu0 0.0
    %185 = vmatpush2.xpose.msra.mxu0 0.0
    %186 = vmatprep.subr.mxu0 0.0
    %187 = vmatpush2.xpose.msra.mxu0 0.0
    %188 = vmatprep.subr.mxu0 0.0
    %189 = vmatpush2.xpose.msra.mxu0 0.0
    %190 = vmatprep.subr.mxu0 0.0
    %191 = vmatpush2.xpose.msra.mxu0 0.0
    %192 = vmatprep.subr.mxu0 0.0
    %193 = vmatpush2.xpose.msra.mxu0 0.0
    %194 = vmatprep.subr.mxu0 0.0
    %195 = vmatpush2.xpose.msra.mxu0 0.0
    %196 = vmatprep.subr.mxu0 0.0
    %197 = vmatpush2.xpose.msra.mxu0 0.0
    %198 = vmatprep.subr.mxu0 0.0
    %199 = vmatpush2.xpose.msra.mxu0 0.0
    %200 = vmatprep.subr.mxu0 0.0
    %201 = vmatpush2.xpose.msra.mxu0 0.0
    %202 = vmatprep.mubr.f32.mxu0 0.0
    %203 = vmatmul.mubr.f32.gmra.mxu0 %v112
    %v204 = vpop.f32.mrf.mxu0
    %v205 = vadd.f32 %v136, %v204
    %v206 = vpop.f32.mrf.mxu0
    %207 = vdwg.mxu0
    %v208 = vxor.u32 %v205, 2147483648
    %v209 = vmul.f32 %v208, 1.442695
    %v210 = vpow.pop %v209
    %v211 = vadd.f32 %v210, 1.0
    %v212 = vrcp.pop %v211
    %v213 = vmul.f32 1.0, %v212
    %214 = vst [vmem:[#allocation2] sm:$0xff] %v213
    // Predicated region
    $region22: #{autoencoder_forward.1} parent=1 // pred_check
      _
    $region23: #{autoencoder_forward.1} parent=1 // pred_check_branch
      %216 = sbr.rel (0) target = $region25
    $region24: #{autoencoder_forward.1} parent=1 // pred_region
      %s218 = ssub.s32 128, 128
      %219 = vsyncadd [#allocation3], %s218
      %s221 = sshll.u32 [#allocation2], 4
      %s222 = int_to_ptr.vmem [resolvable:$true] %s221
      %224 = dma.vmem_to_hbm [thread:$0]  %s222, 128, %s5, [#allocation3]
    $region25: #{autoencoder_forward.1} parent=1 // pred_fallthru
      _
    // Predicated region
    $region26: #{autoencoder_forward.1} parent=1 // pred_check
      _
    $region27: #{autoencoder_forward.1} parent=1 // pred_check_branch
      %226 = sbr.rel (0) target = $region29
    $region28: #{autoencoder_forward.1} parent=1 // pred_region
      %227 = dma.done [#allocation3], 128
    $region29: #{autoencoder_forward.1} parent=1 // pred_fallthru
      _
    %228 = vsyncpa [#allocation3], 1

</llo_original>
